<compile_context>
chip_gen: v5e
topology: v5e:2x2
jax: 0.10.0
libtpu: 0.0.40
codegen_flags: <defaults>
</compile_context>

<pallas_src>
import functools
import math

import jax
import jax.numpy as jnp
from jax import lax
from jax.experimental import pallas as pl
from jax.experimental.pallas import tpu as pltpu


# ---------------------------------------------------------------------------
# Fused MHA kernel: one batch block per grid step, everything in VMEM.
# ---------------------------------------------------------------------------

def _fused_mha_kernel(bblk, sq, sk, nhead, d_k,
                      q_in_ref, k_in_ref, v_in_ref,
                      wq_ref, wk_ref, wv_ref, wo_ref, bo_ref,
                      o_ref):
    # q_in/k_in/v_in : [bblk*S, d_model]  (batch packed onto the sublane axis)
    # w*             : [d_model, d_model] bf16, pre-transposed (y = x @ w); wq has the
    #                  softmax scale 1/sqrt(d_k) folded in.
    # bo             : [1, d_model] f32
    # o              : [bblk*Sq, d_model]
    mxu_dtype = wq_ref.dtype                 # bf16
    d_model = o_ref.shape[-1]

    # Q/K/V projections: one MXU matmul each over the whole batch block,
    # bf16 operands, f32 accumulation.
    q = jnp.dot(q_in_ref[...].astype(mxu_dtype), wq_ref[...],
                preferred_element_type=jnp.float32)          # [bblk*sq, d_model]
    k = jnp.dot(k_in_ref[...].astype(mxu_dtype), wk_ref[...],
                preferred_element_type=jnp.float32)          # [bblk*sk, d_model]
    v = jnp.dot(v_in_ref[...].astype(mxu_dtype), wv_ref[...],
                preferred_element_type=jnp.float32)          # [bblk*sk, d_model]

    wo = wo_ref[...]                                          # [d_model, d_model] bf16
    bias = bo_ref[...].astype(jnp.float32)                    # [1, d_model]

    # Static (bblk, nhead) loops (shapes small & static).  Output projection is fused
    # into the head loop -> no lane-offset concat of head outputs.
    for b in range(bblk):
        rq = slice(b * sq, (b + 1) * sq)
        rk = slice(b * sk, (b + 1) * sk)
        acc = jnp.broadcast_to(bias, (sq, d_model))           # start from out-proj bias
        for h in range(nhead):
            cs = slice(h * d_k, (h + 1) * d_k)
            qh = q[rq, cs].astype(mxu_dtype)                  # [sq, d_k]
            kh = k[rk, cs].astype(mxu_dtype)                  # [sk, d_k]
            vh = v[rk, cs].astype(mxu_dtype)                  # [sk, d_k]

            # scores = (x Wq^T / sqrt(d_k)) @ (x Wk^T)^T  -- contract last dims directly,
            # no explicit transpose of K (scale already folded into wq).
            s = lax.dot_general(qh, kh, (((1,), (1,)), ((), ())),
                                preferred_element_type=jnp.float32)      # [sq, sk] f32

            # Numerically-stable softmax in f32; denominator via EUP approx reciprocal.
            s = s - jnp.max(s, axis=-1, keepdims=True)
            p = jnp.exp(s)
            inv = pl.reciprocal(jnp.sum(p, axis=-1, keepdims=True), approx=True)
            p = (p * inv).astype(mxu_dtype)

            head = jnp.dot(p, vh, preferred_element_type=jnp.float32)    # [sq, d_k]
            # Fused output projection slice: acc += head @ Wo^T[h*d_k:(h+1)*d_k, :]
            acc = acc + jnp.dot(head.astype(mxu_dtype), wo[cs, :],
                                preferred_element_type=jnp.float32)

        o_ref[rq, :] = acc.astype(o_ref.dtype)


# ---------------------------------------------------------------------------
# Wrapper: single pallas_call; one grid step per batch block (default: whole batch).
# ---------------------------------------------------------------------------

def multi_head_attention_forward(params, query, key, value, nhead, *, batch_block=None):
    B, Sq, d_model = query.shape
    Sk = key.shape[1]
    d_k = d_model // nhead

    bblk = B if batch_block is None else batch_block
    assert B % bblk == 0, "batch must be divisible by batch_block"

    # Pack batch onto the sublane axis: [B, S, d_model] -> [B*S, d_model] (free reshape).
    q2 = query.reshape(B * Sq, d_model)
    k2 = key.reshape(B * Sk, d_model)
    v2 = value.reshape(B * Sk, d_model)
    bo2d = params["bo"].reshape(1, d_model)

    kernel = functools.partial(_fused_mha_kernel, bblk, Sq, Sk, nhead, d_k)

    q_spec = pl.BlockSpec((bblk * Sq, d_model), lambda i: (i, 0))
    kv_spec = pl.BlockSpec((bblk * Sk, d_model), lambda i: (i, 0))
    w_spec = pl.BlockSpec((d_model, d_model), lambda i: (0, 0))
    b_spec = pl.BlockSpec((1, d_model), lambda i: (0, 0))

    out2 = pl.pallas_call(
        kernel,
        out_shape=jax.ShapeDtypeStruct((B * Sq, d_model), query.dtype),
        grid=(B // bblk,),
        in_specs=[q_spec, kv_spec, kv_spec,
                  w_spec, w_spec, w_spec, w_spec, b_spec],
        out_specs=pl.BlockSpec((bblk * Sq, d_model), lambda i: (i, 0)),
        compiler_params=pltpu.CompilerParams(
            dimension_semantics=("parallel",)),
    )(q2, k2, v2,
      params["wq_t"], params["wk_t"], params["wv_t"], params["wo_t"], bo2d)

    return out2.reshape(B, Sq, d_model)


# ---------------------------------------------------------------------------
# Pure-JAX f32 reference: mirrors the PyTorch module exactly (raw [out,in] weights,
# scale applied in attention, softmax in f32).
# ---------------------------------------------------------------------------

def _reference_forward(wq, wk, wv, wo, bo, query, key, value, nhead):
    B, Sq, d_model = query.shape
    Sk = key.shape[1]
    d_k = d_model // nhead
    q = (query @ wq.T).reshape(B, Sq, nhead, d_k).transpose(0, 2, 1, 3)
    k = (key @ wk.T).reshape(B, Sk, nhead, d_k).transpose(0, 2, 1, 3)
    v = (value @ wv.T).reshape(B, Sk, nhead, d_k).transpose(0, 2, 1, 3)
    s = jnp.einsum("bhqd,bhkd->bhqk", q, k) / math.sqrt(d_k)
    p = jax.nn.softmax(s, axis=-1)
    o = jnp.einsum("bhqk,bhkd->bhqd", p, v)
    concat = o.transpose(0, 2, 1, 3).reshape(B, Sq, d_model)
    return concat @ wo.T + bo


# ---------------------------------------------------------------------------
# Main
# ---------------------------------------------------------------------------

if __name__ == "__main__":
    d_model = 32
    nhead = 4
    B, S = 2, 8
    d_k = d_model // nhead

    root = jax.random.PRNGKey(0)
    k_wq, k_wk, k_wv, k_wo, k_bo, k_q, k_k, k_v = jax.random.split(root, 8)

    init_scale = 1.0 / math.sqrt(d_model)
    # nn.Linear weights are [out, in]; kept in f32 for the reference.
    wq = jax.random.uniform(k_wq, (d_model, d_model), jnp.float32, -init_scale, init_scale)
    wk = jax.random.uniform(k_wk, (d_model, d_model), jnp.float32, -init_scale, init_scale)
    wv = jax.random.uniform(k_wv, (d_model, d_model), jnp.float32, -init_scale, init_scale)
    wo = jax.random.uniform(k_wo, (d_model, d_model), jnp.float32, -init_scale, init_scale)
    bo = jax.random.uniform(k_bo, (d_model,), jnp.float32, -init_scale, init_scale)

    softmax_scale = 1.0 / math.sqrt(d_k)
    # Kernel params: pre-transposed once (y = x @ W.T), bf16 for the MXU,
    # softmax scale folded into wq_t.  Bias stays f32.
    params = {
        "wq_t": (wq.T * softmax_scale).astype(jnp.bfloat16),
        "wk_t": wk.T.astype(jnp.bfloat16),
        "wv_t": wv.T.astype(jnp.bfloat16),
        "wo_t": wo.T.astype(jnp.bfloat16),
        "bo": bo,
    }

    query = jax.random.normal(k_q, (B, S, d_model), jnp.float32)
    key = jax.random.normal(k_k, (B, S, d_model), jnp.float32)
    value = jax.random.normal(k_v, (B, S, d_model), jnp.float32)

    out = multi_head_attention_forward(params, query, key, value, nhead)
    out = jax.block_until_ready(out)

    ref = _reference_forward(wq, wk, wv, wo, bo, query, key, value, nhead)
    assert out.shape == (B, S, d_model)
    # Tolerance accounts for bf16 MXU operands + EUP approximate reciprocal vs f32 reference.
    assert jnp.allclose(out, ref, atol=3e-2, rtol=3e-2), "Pallas output mismatch vs reference"

    print("KERNEL_OK")
</pallas_src>

<mosaic_0001>
module attributes {stable_mosaic.version = 11 : i64} {
  func.func @_fused_mha_kernel(%arg0: i32, %arg1: memref<16x32xf32, #tpu.memory_space<vmem>>, %arg2: memref<16x32xf32, #tpu.memory_space<vmem>>, %arg3: memref<16x32xf32, #tpu.memory_space<vmem>>, %arg4: memref<32x32xbf16, #tpu.memory_space<vmem>>, %arg5: memref<32x32xbf16, #tpu.memory_space<vmem>>, %arg6: memref<32x32xbf16, #tpu.memory_space<vmem>>, %arg7: memref<32x32xbf16, #tpu.memory_space<vmem>>, %arg8: memref<1x32xf32, #tpu.memory_space<vmem>>, %arg9: memref<16x32xf32, #tpu.memory_space<vmem>>) attributes {dimension_semantics = [#tpu.dimension_semantics<parallel>], iteration_bounds = array<i64: 1>, scalar_prefetch = 0 : i64, scratch_operands = 0 : i64, tpu.core_type = #tpu.core_type<tc>, window_params = [{transform_indices = @transform_0, window_bounds = array<i64: 16, 32>}, {transform_indices = @transform_1, window_bounds = array<i64: 16, 32>}, {transform_indices = @transform_2, window_bounds = array<i64: 16, 32>}, {pipeline_mode = #tpu.pipeline_mode<synchronous>, transform_indices = @transform_3, window_bounds = array<i64: 32, 32>}, {pipeline_mode = #tpu.pipeline_mode<synchronous>, transform_indices = @transform_4, window_bounds = array<i64: 32, 32>}, {pipeline_mode = #tpu.pipeline_mode<synchronous>, transform_indices = @transform_5, window_bounds = array<i64: 32, 32>}, {pipeline_mode = #tpu.pipeline_mode<synchronous>, transform_indices = @transform_6, window_bounds = array<i64: 32, 32>}, {pipeline_mode = #tpu.pipeline_mode<synchronous>, transform_indices = @transform_7, window_bounds = array<i64: 1, 32>}, {transform_indices = @transform_8, window_bounds = array<i64: 16, 32>}]} {
    %c0 = arith.constant 0 : index
    %c0_0 = arith.constant 0 : index
    %0 = vector.load %arg1[%c0, %c0_0] : memref<16x32xf32, #tpu.memory_space<vmem>>, vector<16x32xf32>
    %1 = arith.truncf %0 : vector<16x32xf32> to vector<16x32xbf16>
    %c0_1 = arith.constant 0 : index
    %c0_2 = arith.constant 0 : index
    %2 = vector.load %arg4[%c0_1, %c0_2] : memref<32x32xbf16, #tpu.memory_space<vmem>>, vector<32x32xbf16>
    %cst = arith.constant dense<0.000000e+00> : vector<16x32xf32>
    %3 = tpu.matmul %1, %2, %cst {dimension_numbers = #tpu.dot_dimension_numbers<[1], [0], [0], [1], [0, 0, 1, 1], [], []>} : vector<16x32xbf16>, vector<32x32xbf16>, vector<16x32xf32> -> vector<16x32xf32>
    %c0_3 = arith.constant 0 : index
    %c0_4 = arith.constant 0 : index
    %4 = vector.load %arg2[%c0_3, %c0_4] : memref<16x32xf32, #tpu.memory_space<vmem>>, vector<16x32xf32>
    %5 = arith.truncf %4 : vector<16x32xf32> to vector<16x32xbf16>
    %c0_5 = arith.constant 0 : index
    %c0_6 = arith.constant 0 : index
    %6 = vector.load %arg5[%c0_5, %c0_6] : memref<32x32xbf16, #tpu.memory_space<vmem>>, vector<32x32xbf16>
    %cst_7 = arith.constant dense<0.000000e+00> : vector<16x32xf32>
    %7 = tpu.matmul %5, %6, %cst_7 {dimension_numbers = #tpu.dot_dimension_numbers<[1], [0], [0], [1], [0, 0, 1, 1], [], []>} : vector<16x32xbf16>, vector<32x32xbf16>, vector<16x32xf32> -> vector<16x32xf32>
    %c0_8 = arith.constant 0 : index
    %c0_9 = arith.constant 0 : index
    %8 = vector.load %arg3[%c0_8, %c0_9] : memref<16x32xf32, #tpu.memory_space<vmem>>, vector<16x32xf32>
    %9 = arith.truncf %8 : vector<16x32xf32> to vector<16x32xbf16>
    %c0_10 = arith.constant 0 : index
    %c0_11 = arith.constant 0 : index
    %10 = vector.load %arg6[%c0_10, %c0_11] : memref<32x32xbf16, #tpu.memory_space<vmem>>, vector<32x32xbf16>
    %cst_12 = arith.constant dense<0.000000e+00> : vector<16x32xf32>
    %11 = tpu.matmul %9, %10, %cst_12 {dimension_numbers = #tpu.dot_dimension_numbers<[1], [0], [0], [1], [0, 0, 1, 1], [], []>} : vector<16x32xbf16>, vector<32x32xbf16>, vector<16x32xf32> -> vector<16x32xf32>
    %c0_13 = arith.constant 0 : index
    %c0_14 = arith.constant 0 : index
    %12 = vector.load %arg7[%c0_13, %c0_14] : memref<32x32xbf16, #tpu.memory_space<vmem>>, vector<32x32xbf16>
    %c0_15 = arith.constant 0 : index
    %c0_16 = arith.constant 0 : index
    %13 = vector.load %arg8[%c0_15, %c0_16] : memref<1x32xf32, #tpu.memory_space<vmem>>, vector<1x32xf32>
    %14 = vector.shape_cast %13 : vector<1x32xf32> to vector<1x32xf32>
    %15 = vector.broadcast %14 : vector<1x32xf32> to vector<8x32xf32>
    %16 = vector.extract_strided_slice %3 {offsets = [0, 0], sizes = [8, 8], strides = [1, 1]} : vector<16x32xf32> to vector<8x8xf32>
    %17 = arith.truncf %16 : vector<8x8xf32> to vector<8x8xbf16>
    %18 = vector.extract_strided_slice %7 {offsets = [0, 0], sizes = [8, 8], strides = [1, 1]} : vector<16x32xf32> to vector<8x8xf32>
    %19 = arith.truncf %18 : vector<8x8xf32> to vector<8x8xbf16>
    %20 = vector.extract_strided_slice %11 {offsets = [0, 0], sizes = [8, 8], strides = [1, 1]} : vector<16x32xf32> to vector<8x8xf32>
    %21 = arith.truncf %20 : vector<8x8xf32> to vector<8x8xbf16>
    %cst_17 = arith.constant dense<0.000000e+00> : vector<8x8xf32>
    %22 = tpu.matmul %17, %19, %cst_17 {dimension_numbers = #tpu.dot_dimension_numbers<[1], [1], [0], [0], [0, 0, 1, 0], [], []>} : vector<8x8xbf16>, vector<8x8xbf16>, vector<8x8xf32> -> vector<8x8xf32>
    %cst_18 = arith.constant dense<0xFF800000> : vector<8xf32>
    %23 = vector.multi_reduction <maximumf>, %22, %cst_18 [1] : vector<8x8xf32> to vector<8xf32>
    %24 = vector.shape_cast %23 : vector<8xf32> to vector<8x1xf32>
    %25 = vector.broadcast %24 : vector<8x1xf32> to vector<8x8xf32>
    %26 = arith.subf %22, %25 : vector<8x8xf32>
    %27 = math.exp %26 : vector<8x8xf32>
    %cst_19 = arith.constant dense<0.000000e+00> : vector<8xf32>
    %28 = vector.multi_reduction <add>, %27, %cst_19 [1] : vector<8x8xf32> to vector<8xf32>
    %29 = vector.shape_cast %28 : vector<8xf32> to vector<8x1xf32>
    %30 = tpu.reciprocal %29 {approx = true} : vector<8x1xf32> -> vector<8x1xf32>
    %31 = vector.broadcast %30 : vector<8x1xf32> to vector<8x8xf32>
    %32 = arith.mulf %27, %31 : vector<8x8xf32>
    %33 = arith.truncf %32 : vector<8x8xf32> to vector<8x8xbf16>
    %cst_20 = arith.constant dense<0.000000e+00> : vector<8x8xf32>
    %34 = tpu.matmul %33, %21, %cst_20 {dimension_numbers = #tpu.dot_dimension_numbers<[1], [0], [0], [1], [0, 0, 1, 1], [], []>} : vector<8x8xbf16>, vector<8x8xbf16>, vector<8x8xf32> -> vector<8x8xf32>
    %35 = arith.truncf %34 : vector<8x8xf32> to vector<8x8xbf16>
    %36 = vector.extract_strided_slice %12 {offsets = [0, 0], sizes = [8, 32], strides = [1, 1]} : vector<32x32xbf16> to vector<8x32xbf16>
    %cst_21 = arith.constant dense<0.000000e+00> : vector<8x32xf32>
    %37 = tpu.matmul %35, %36, %cst_21 {dimension_numbers = #tpu.dot_dimension_numbers<[1], [0], [0], [1], [0, 0, 1, 1], [], []>} : vector<8x8xbf16>, vector<8x32xbf16>, vector<8x32xf32> -> vector<8x32xf32>
    %38 = arith.addf %15, %37 : vector<8x32xf32>
    %39 = vector.extract_strided_slice %3 {offsets = [0, 8], sizes = [8, 8], strides = [1, 1]} : vector<16x32xf32> to vector<8x8xf32>
    %40 = arith.truncf %39 : vector<8x8xf32> to vector<8x8xbf16>
    %41 = vector.extract_strided_slice %7 {offsets = [0, 8], sizes = [8, 8], strides = [1, 1]} : vector<16x32xf32> to vector<8x8xf32>
    %42 = arith.truncf %41 : vector<8x8xf32> to vector<8x8xbf16>
    %43 = vector.extract_strided_slice %11 {offsets = [0, 8], sizes = [8, 8], strides = [1, 1]} : vector<16x32xf32> to vector<8x8xf32>
    %44 = arith.truncf %43 : vector<8x8xf32> to vector<8x8xbf16>
    %cst_22 = arith.constant dense<0.000000e+00> : vector<8x8xf32>
    %45 = tpu.matmul %40, %42, %cst_22 {dimension_numbers = #tpu.dot_dimension_numbers<[1], [1], [0], [0], [0, 0, 1, 0], [], []>} : vector<8x8xbf16>, vector<8x8xbf16>, vector<8x8xf32> -> vector<8x8xf32>
    %cst_23 = arith.constant dense<0xFF800000> : vector<8xf32>
    %46 = vector.multi_reduction <maximumf>, %45, %cst_23 [1] : vector<8x8xf32> to vector<8xf32>
    %47 = vector.shape_cast %46 : vector<8xf32> to vector<8x1xf32>
    %48 = vector.broadcast %47 : vector<8x1xf32> to vector<8x8xf32>
    %49 = arith.subf %45, %48 : vector<8x8xf32>
    %50 = math.exp %49 : vector<8x8xf32>
    %cst_24 = arith.constant dense<0.000000e+00> : vector<8xf32>
    %51 = vector.multi_reduction <add>, %50, %cst_24 [1] : vector<8x8xf32> to vector<8xf32>
    %52 = vector.shape_cast %51 : vector<8xf32> to vector<8x1xf32>
    %53 = tpu.reciprocal %52 {approx = true} : vector<8x1xf32> -> vector<8x1xf32>
    %54 = vector.broadcast %53 : vector<8x1xf32> to vector<8x8xf32>
    %55 = arith.mulf %50, %54 : vector<8x8xf32>
    %56 = arith.truncf %55 : vector<8x8xf32> to vector<8x8xbf16>
    %cst_25 = arith.constant dense<0.000000e+00> : vector<8x8xf32>
    %57 = tpu.matmul %56, %44, %cst_25 {dimension_numbers = #tpu.dot_dimension_numbers<[1], [0], [0], [1], [0, 0, 1, 1], [], []>} : vector<8x8xbf16>, vector<8x8xbf16>, vector<8x8xf32> -> vector<8x8xf32>
    %58 = arith.truncf %57 : vector<8x8xf32> to vector<8x8xbf16>
    %59 = vector.extract_strided_slice %12 {offsets = [8, 0], sizes = [8, 32], strides = [1, 1]} : vector<32x32xbf16> to vector<8x32xbf16>
    %cst_26 = arith.constant dense<0.000000e+00> : vector<8x32xf32>
    %60 = tpu.matmul %58, %59, %cst_26 {dimension_numbers = #tpu.dot_dimension_numbers<[1], [0], [0], [1], [0, 0, 1, 1], [], []>} : vector<8x8xbf16>, vector<8x32xbf16>, vector<8x32xf32> -> vector<8x32xf32>
    %61 = arith.addf %38, %60 : vector<8x32xf32>
    %62 = vector.extract_strided_slice %3 {offsets = [0, 16], sizes = [8, 8], strides = [1, 1]} : vector<16x32xf32> to vector<8x8xf32>
    %63 = arith.truncf %62 : vector<8x8xf32> to vector<8x8xbf16>
    %64 = vector.extract_strided_slice %7 {offsets = [0, 16], sizes = [8, 8], strides = [1, 1]} : vector<16x32xf32> to vector<8x8xf32>
    %65 = arith.truncf %64 : vector<8x8xf32> to vector<8x8xbf16>
    %66 = vector.extract_strided_slice %11 {offsets = [0, 16], sizes = [8, 8], strides = [1, 1]} : vector<16x32xf32> to vector<8x8xf32>
    %67 = arith.truncf %66 : vector<8x8xf32> to vector<8x8xbf16>
    %cst_27 = arith.constant dense<0.000000e+00> : vector<8x8xf32>
    %68 = tpu.matmul %63, %65, %cst_27 {dimension_numbers = #tpu.dot_dimension_numbers<[1], [1], [0], [0], [0, 0, 1, 0], [], []>} : vector<8x8xbf16>, vector<8x8xbf16>, vector<8x8xf32> -> vector<8x8xf32>
    %cst_28 = arith.constant dense<0xFF800000> : vector<8xf32>
    %69 = vector.multi_reduction <maximumf>, %68, %cst_28 [1] : vector<8x8xf32> to vector<8xf32>
    %70 = vector.shape_cast %69 : vector<8xf32> to vector<8x1xf32>
    %71 = vector.broadcast %70 : vector<8x1xf32> to vector<8x8xf32>
    %72 = arith.subf %68, %71 : vector<8x8xf32>
    %73 = math.exp %72 : vector<8x8xf32>
    %cst_29 = arith.constant dense<0.000000e+00> : vector<8xf32>
    %74 = vector.multi_reduction <add>, %73, %cst_29 [1] : vector<8x8xf32> to vector<8xf32>
    %75 = vector.shape_cast %74 : vector<8xf32> to vector<8x1xf32>
    %76 = tpu.reciprocal %75 {approx = true} : vector<8x1xf32> -> vector<8x1xf32>
    %77 = vector.broadcast %76 : vector<8x1xf32> to vector<8x8xf32>
    %78 = arith.mulf %73, %77 : vector<8x8xf32>
    %79 = arith.truncf %78 : vector<8x8xf32> to vector<8x8xbf16>
    %cst_30 = arith.constant dense<0.000000e+00> : vector<8x8xf32>
    %80 = tpu.matmul %79, %67, %cst_30 {dimension_numbers = #tpu.dot_dimension_numbers<[1], [0], [0], [1], [0, 0, 1, 1], [], []>} : vector<8x8xbf16>, vector<8x8xbf16>, vector<8x8xf32> -> vector<8x8xf32>
    %81 = arith.truncf %80 : vector<8x8xf32> to vector<8x8xbf16>
    %82 = vector.extract_strided_slice %12 {offsets = [16, 0], sizes = [8, 32], strides = [1, 1]} : vector<32x32xbf16> to vector<8x32xbf16>
    %cst_31 = arith.constant dense<0.000000e+00> : vector<8x32xf32>
    %83 = tpu.matmul %81, %82, %cst_31 {dimension_numbers = #tpu.dot_dimension_numbers<[1], [0], [0], [1], [0, 0, 1, 1], [], []>} : vector<8x8xbf16>, vector<8x32xbf16>, vector<8x32xf32> -> vector<8x32xf32>
    %84 = arith.addf %61, %83 : vector<8x32xf32>
    %85 = vector.extract_strided_slice %3 {offsets = [0, 24], sizes = [8, 8], strides = [1, 1]} : vector<16x32xf32> to vector<8x8xf32>
    %86 = arith.truncf %85 : vector<8x8xf32> to vector<8x8xbf16>
    %87 = vector.extract_strided_slice %7 {offsets = [0, 24], sizes = [8, 8], strides = [1, 1]} : vector<16x32xf32> to vector<8x8xf32>
    %88 = arith.truncf %87 : vector<8x8xf32> to vector<8x8xbf16>
    %89 = vector.extract_strided_slice %11 {offsets = [0, 24], sizes = [8, 8], strides = [1, 1]} : vector<16x32xf32> to vector<8x8xf32>
    %90 = arith.truncf %89 : vector<8x8xf32> to vector<8x8xbf16>
    %cst_32 = arith.constant dense<0.000000e+00> : vector<8x8xf32>
    %91 = tpu.matmul %86, %88, %cst_32 {dimension_numbers = #tpu.dot_dimension_numbers<[1], [1], [0], [0], [0, 0, 1, 0], [], []>} : vector<8x8xbf16>, vector<8x8xbf16>, vector<8x8xf32> -> vector<8x8xf32>
    %cst_33 = arith.constant dense<0xFF800000> : vector<8xf32>
    %92 = vector.multi_reduction <maximumf>, %91, %cst_33 [1] : vector<8x8xf32> to vector<8xf32>
    %93 = vector.shape_cast %92 : vector<8xf32> to vector<8x1xf32>
    %94 = vector.broadcast %93 : vector<8x1xf32> to vector<8x8xf32>
    %95 = arith.subf %91, %94 : vector<8x8xf32>
    %96 = math.exp %95 : vector<8x8xf32>
    %cst_34 = arith.constant dense<0.000000e+00> : vector<8xf32>
    %97 = vector.multi_reduction <add>, %96, %cst_34 [1] : vector<8x8xf32> to vector<8xf32>
    %98 = vector.shape_cast %97 : vector<8xf32> to vector<8x1xf32>
    %99 = tpu.reciprocal %98 {approx = true} : vector<8x1xf32> -> vector<8x1xf32>
    %100 = vector.broadcast %99 : vector<8x1xf32> to vector<8x8xf32>
    %101 = arith.mulf %96, %100 : vector<8x8xf32>
    %102 = arith.truncf %101 : vector<8x8xf32> to vector<8x8xbf16>
    %cst_35 = arith.constant dense<0.000000e+00> : vector<8x8xf32>
    %103 = tpu.matmul %102, %90, %cst_35 {dimension_numbers = #tpu.dot_dimension_numbers<[1], [0], [0], [1], [0, 0, 1, 1], [], []>} : vector<8x8xbf16>, vector<8x8xbf16>, vector<8x8xf32> -> vector<8x8xf32>
    %104 = arith.truncf %103 : vector<8x8xf32> to vector<8x8xbf16>
    %105 = vector.extract_strided_slice %12 {offsets = [24, 0], sizes = [8, 32], strides = [1, 1]} : vector<32x32xbf16> to vector<8x32xbf16>
    %cst_36 = arith.constant dense<0.000000e+00> : vector<8x32xf32>
    %106 = tpu.matmul %104, %105, %cst_36 {dimension_numbers = #tpu.dot_dimension_numbers<[1], [0], [0], [1], [0, 0, 1, 1], [], []>} : vector<8x8xbf16>, vector<8x32xbf16>, vector<8x32xf32> -> vector<8x32xf32>
    %107 = arith.addf %84, %106 : vector<8x32xf32>
    %c0_37 = arith.constant 0 : index
    %c0_38 = arith.constant 0 : index
    %108 = vector.load %arg9[%c0_37, %c0_38] : memref<16x32xf32, #tpu.memory_space<vmem>>, vector<8x32xf32>
    tpu.vector_store %arg9[%c0_37, %c0_38], %107 {strides = array<i32>} : memref<16x32xf32, #tpu.memory_space<vmem>>, vector<8x32xf32>,
    %109 = vector.shape_cast %13 : vector<1x32xf32> to vector<1x32xf32>
    %110 = vector.broadcast %109 : vector<1x32xf32> to vector<8x32xf32>
    %111 = vector.extract_strided_slice %3 {offsets = [8, 0], sizes = [8, 8], strides = [1, 1]} : vector<16x32xf32> to vector<8x8xf32>
    %112 = arith.truncf %111 : vector<8x8xf32> to vector<8x8xbf16>
    %113 = vector.extract_strided_slice %7 {offsets = [8, 0], sizes = [8, 8], strides = [1, 1]} : vector<16x32xf32> to vector<8x8xf32>
    %114 = arith.truncf %113 : vector<8x8xf32> to vector<8x8xbf16>
    %115 = vector.extract_strided_slice %11 {offsets = [8, 0], sizes = [8, 8], strides = [1, 1]} : vector<16x32xf32> to vector<8x8xf32>
    %116 = arith.truncf %115 : vector<8x8xf32> to vector<8x8xbf16>
    %cst_39 = arith.constant dense<0.000000e+00> : vector<8x8xf32>
    %117 = tpu.matmul %112, %114, %cst_39 {dimension_numbers = #tpu.dot_dimension_numbers<[1], [1], [0], [0], [0, 0, 1, 0], [], []>} : vector<8x8xbf16>, vector<8x8xbf16>, vector<8x8xf32> -> vector<8x8xf32>
    %cst_40 = arith.constant dense<0xFF800000> : vector<8xf32>
    %118 = vector.multi_reduction <maximumf>, %117, %cst_40 [1] : vector<8x8xf32> to vector<8xf32>
    %119 = vector.shape_cast %118 : vector<8xf32> to vector<8x1xf32>
    %120 = vector.broadcast %119 : vector<8x1xf32> to vector<8x8xf32>
    %121 = arith.subf %117, %120 : vector<8x8xf32>
    %122 = math.exp %121 : vector<8x8xf32>
    %cst_41 = arith.constant dense<0.000000e+00> : vector<8xf32>
    %123 = vector.multi_reduction <add>, %122, %cst_41 [1] : vector<8x8xf32> to vector<8xf32>
    %124 = vector.shape_cast %123 : vector<8xf32> to vector<8x1xf32>
    %125 = tpu.reciprocal %124 {approx = true} : vector<8x1xf32> -> vector<8x1xf32>
    %126 = vector.broadcast %125 : vector<8x1xf32> to vector<8x8xf32>
    %127 = arith.mulf %122, %126 : vector<8x8xf32>
    %128 = arith.truncf %127 : vector<8x8xf32> to vector<8x8xbf16>
    %cst_42 = arith.constant dense<0.000000e+00> : vector<8x8xf32>
    %129 = tpu.matmul %128, %116, %cst_42 {dimension_numbers = #tpu.dot_dimension_numbers<[1], [0], [0], [1], [0, 0, 1, 1], [], []>} : vector<8x8xbf16>, vector<8x8xbf16>, vector<8x8xf32> -> vector<8x8xf32>
    %130 = arith.truncf %129 : vector<8x8xf32> to vector<8x8xbf16>
    %131 = vector.extract_strided_slice %12 {offsets = [0, 0], sizes = [8, 32], strides = [1, 1]} : vector<32x32xbf16> to vector<8x32xbf16>
    %cst_43 = arith.constant dense<0.000000e+00> : vector<8x32xf32>
    %132 = tpu.matmul %130, %131, %cst_43 {dimension_numbers = #tpu.dot_dimension_numbers<[1], [0], [0], [1], [0, 0, 1, 1], [], []>} : vector<8x8xbf16>, vector<8x32xbf16>, vector<8x32xf32> -> vector<8x32xf32>
    %133 = arith.addf %110, %132 : vector<8x32xf32>
    %134 = vector.extract_strided_slice %3 {offsets = [8, 8], sizes = [8, 8], strides = [1, 1]} : vector<16x32xf32> to vector<8x8xf32>
    %135 = arith.truncf %134 : vector<8x8xf32> to vector<8x8xbf16>
    %136 = vector.extract_strided_slice %7 {offsets = [8, 8], sizes = [8, 8], strides = [1, 1]} : vector<16x32xf32> to vector<8x8xf32>
    %137 = arith.truncf %136 : vector<8x8xf32> to vector<8x8xbf16>
    %138 = vector.extract_strided_slice %11 {offsets = [8, 8], sizes = [8, 8], strides = [1, 1]} : vector<16x32xf32> to vector<8x8xf32>
    %139 = arith.truncf %138 : vector<8x8xf32> to vector<8x8xbf16>
    %cst_44 = arith.constant dense<0.000000e+00> : vector<8x8xf32>
    %140 = tpu.matmul %135, %137, %cst_44 {dimension_numbers = #tpu.dot_dimension_numbers<[1], [1], [0], [0], [0, 0, 1, 0], [], []>} : vector<8x8xbf16>, vector<8x8xbf16>, vector<8x8xf32> -> vector<8x8xf32>
    %cst_45 = arith.constant dense<0xFF800000> : vector<8xf32>
    %141 = vector.multi_reduction <maximumf>, %140, %cst_45 [1] : vector<8x8xf32> to vector<8xf32>
    %142 = vector.shape_cast %141 : vector<8xf32> to vector<8x1xf32>
    %143 = vector.broadcast %142 : vector<8x1xf32> to vector<8x8xf32>
    %144 = arith.subf %140, %143 : vector<8x8xf32>
    %145 = math.exp %144 : vector<8x8xf32>
    %cst_46 = arith.constant dense<0.000000e+00> : vector<8xf32>
    %146 = vector.multi_reduction <add>, %145, %cst_46 [1] : vector<8x8xf32> to vector<8xf32>
    %147 = vector.shape_cast %146 : vector<8xf32> to vector<8x1xf32>
    %148 = tpu.reciprocal %147 {approx = true} : vector<8x1xf32> -> vector<8x1xf32>
    %149 = vector.broadcast %148 : vector<8x1xf32> to vector<8x8xf32>
    %150 = arith.mulf %145, %149 : vector<8x8xf32>
    %151 = arith.truncf %150 : vector<8x8xf32> to vector<8x8xbf16>
    %cst_47 = arith.constant dense<0.000000e+00> : vector<8x8xf32>
    %152 = tpu.matmul %151, %139, %cst_47 {dimension_numbers = #tpu.dot_dimension_numbers<[1], [0], [0], [1], [0, 0, 1, 1], [], []>} : vector<8x8xbf16>, vector<8x8xbf16>, vector<8x8xf32> -> vector<8x8xf32>
    %153 = arith.truncf %152 : vector<8x8xf32> to vector<8x8xbf16>
    %154 = vector.extract_strided_slice %12 {offsets = [8, 0], sizes = [8, 32], strides = [1, 1]} : vector<32x32xbf16> to vector<8x32xbf16>
    %cst_48 = arith.constant dense<0.000000e+00> : vector<8x32xf32>
    %155 = tpu.matmul %153, %154, %cst_48 {dimension_numbers = #tpu.dot_dimension_numbers<[1], [0], [0], [1], [0, 0, 1, 1], [], []>} : vector<8x8xbf16>, vector<8x32xbf16>, vector<8x32xf32> -> vector<8x32xf32>
    %156 = arith.addf %133, %155 : vector<8x32xf32>
    %157 = vector.extract_strided_slice %3 {offsets = [8, 16], sizes = [8, 8], strides = [1, 1]} : vector<16x32xf32> to vector<8x8xf32>
    %158 = arith.truncf %157 : vector<8x8xf32> to vector<8x8xbf16>
    %159 = vector.extract_strided_slice %7 {offsets = [8, 16], sizes = [8, 8], strides = [1, 1]} : vector<16x32xf32> to vector<8x8xf32>
    %160 = arith.truncf %159 : vector<8x8xf32> to vector<8x8xbf16>
    %161 = vector.extract_strided_slice %11 {offsets = [8, 16], sizes = [8, 8], strides = [1, 1]} : vector<16x32xf32> to vector<8x8xf32>
    %162 = arith.truncf %161 : vector<8x8xf32> to vector<8x8xbf16>
    %cst_49 = arith.constant dense<0.000000e+00> : vector<8x8xf32>
    %163 = tpu.matmul %158, %160, %cst_49 {dimension_numbers = #tpu.dot_dimension_numbers<[1], [1], [0], [0], [0, 0, 1, 0], [], []>} : vector<8x8xbf16>, vector<8x8xbf16>, vector<8x8xf32> -> vector<8x8xf32>
    %cst_50 = arith.constant dense<0xFF800000> : vector<8xf32>
    %164 = vector.multi_reduction <maximumf>, %163, %cst_50 [1] : vector<8x8xf32> to vector<8xf32>
    %165 = vector.shape_cast %164 : vector<8xf32> to vector<8x1xf32>
    %166 = vector.broadcast %165 : vector<8x1xf32> to vector<8x8xf32>
    %167 = arith.subf %163, %166 : vector<8x8xf32>
    %168 = math.exp %167 : vector<8x8xf32>
    %cst_51 = arith.constant dense<0.000000e+00> : vector<8xf32>
    %169 = vector.multi_reduction <add>, %168, %cst_51 [1] : vector<8x8xf32> to vector<8xf32>
    %170 = vector.shape_cast %169 : vector<8xf32> to vector<8x1xf32>
    %171 = tpu.reciprocal %170 {approx = true} : vector<8x1xf32> -> vector<8x1xf32>
    %172 = vector.broadcast %171 : vector<8x1xf32> to vector<8x8xf32>
    %173 = arith.mulf %168, %172 : vector<8x8xf32>
    %174 = arith.truncf %173 : vector<8x8xf32> to vector<8x8xbf16>
    %cst_52 = arith.constant dense<0.000000e+00> : vector<8x8xf32>
    %175 = tpu.matmul %174, %162, %cst_52 {dimension_numbers = #tpu.dot_dimension_numbers<[1], [0], [0], [1], [0, 0, 1, 1], [], []>} : vector<8x8xbf16>, vector<8x8xbf16>, vector<8x8xf32> -> vector<8x8xf32>
    %176 = arith.truncf %175 : vector<8x8xf32> to vector<8x8xbf16>
    %177 = vector.extract_strided_slice %12 {offsets = [16, 0], sizes = [8, 32], strides = [1, 1]} : vector<32x32xbf16> to vector<8x32xbf16>
    %cst_53 = arith.constant dense<0.000000e+00> : vector<8x32xf32>
    %178 = tpu.matmul %176, %177, %cst_53 {dimension_numbers = #tpu.dot_dimension_numbers<[1], [0], [0], [1], [0, 0, 1, 1], [], []>} : vector<8x8xbf16>, vector<8x32xbf16>, vector<8x32xf32> -> vector<8x32xf32>
    %179 = arith.addf %156, %178 : vector<8x32xf32>
    %180 = vector.extract_strided_slice %3 {offsets = [8, 24], sizes = [8, 8], strides = [1, 1]} : vector<16x32xf32> to vector<8x8xf32>
    %181 = arith.truncf %180 : vector<8x8xf32> to vector<8x8xbf16>
    %182 = vector.extract_strided_slice %7 {offsets = [8, 24], sizes = [8, 8], strides = [1, 1]} : vector<16x32xf32> to vector<8x8xf32>
    %183 = arith.truncf %182 : vector<8x8xf32> to vector<8x8xbf16>
    %184 = vector.extract_strided_slice %11 {offsets = [8, 24], sizes = [8, 8], strides = [1, 1]} : vector<16x32xf32> to vector<8x8xf32>
    %185 = arith.truncf %184 : vector<8x8xf32> to vector<8x8xbf16>
    %cst_54 = arith.constant dense<0.000000e+00> : vector<8x8xf32>
    %186 = tpu.matmul %181, %183, %cst_54 {dimension_numbers = #tpu.dot_dimension_numbers<[1], [1], [0], [0], [0, 0, 1, 0], [], []>} : vector<8x8xbf16>, vector<8x8xbf16>, vector<8x8xf32> -> vector<8x8xf32>
    %cst_55 = arith.constant dense<0xFF800000> : vector<8xf32>
    %187 = vector.multi_reduction <maximumf>, %186, %cst_55 [1] : vector<8x8xf32> to vector<8xf32>
    %188 = vector.shape_cast %187 : vector<8xf32> to vector<8x1xf32>
    %189 = vector.broadcast %188 : vector<8x1xf32> to vector<8x8xf32>
    %190 = arith.subf %186, %189 : vector<8x8xf32>
    %191 = math.exp %190 : vector<8x8xf32>
    %cst_56 = arith.constant dense<0.000000e+00> : vector<8xf32>
    %192 = vector.multi_reduction <add>, %191, %cst_56 [1] : vector<8x8xf32> to vector<8xf32>
    %193 = vector.shape_cast %192 : vector<8xf32> to vector<8x1xf32>
    %194 = tpu.reciprocal %193 {approx = true} : vector<8x1xf32> -> vector<8x1xf32>
    %195 = vector.broadcast %194 : vector<8x1xf32> to vector<8x8xf32>
    %196 = arith.mulf %191, %195 : vector<8x8xf32>
    %197 = arith.truncf %196 : vector<8x8xf32> to vector<8x8xbf16>
    %cst_57 = arith.constant dense<0.000000e+00> : vector<8x8xf32>
    %198 = tpu.matmul %197, %185, %cst_57 {dimension_numbers = #tpu.dot_dimension_numbers<[1], [0], [0], [1], [0, 0, 1, 1], [], []>} : vector<8x8xbf16>, vector<8x8xbf16>, vector<8x8xf32> -> vector<8x8xf32>
    %199 = arith.truncf %198 : vector<8x8xf32> to vector<8x8xbf16>
    %200 = vector.extract_strided_slice %12 {offsets = [24, 0], sizes = [8, 32], strides = [1, 1]} : vector<32x32xbf16> to vector<8x32xbf16>
    %cst_58 = arith.constant dense<0.000000e+00> : vector<8x32xf32>
    %201 = tpu.matmul %199, %200, %cst_58 {dimension_numbers = #tpu.dot_dimension_numbers<[1], [0], [0], [1], [0, 0, 1, 1], [], []>} : vector<8x8xbf16>, vector<8x32xbf16>, vector<8x32xf32> -> vector<8x32xf32>
    %202 = arith.addf %179, %201 : vector<8x32xf32>
    %c8 = arith.constant 8 : index
    %c0_59 = arith.constant 0 : index
    %203 = vector.load %arg9[%c8, %c0_59] : memref<16x32xf32, #tpu.memory_space<vmem>>, vector<8x32xf32>
    tpu.vector_store %arg9[%c8, %c0_59], %202 {strides = array<i32>} : memref<16x32xf32, #tpu.memory_space<vmem>>, vector<8x32xf32>,
    return
  }
  func.func @transform_0(%arg0: i32) -> (i32, i32) {
    %c0_i32 = arith.constant 0 : i32
    %c0_i32_0 = arith.constant 0 : i32
    return %arg0, %c0_i32 : i32, i32
  }
  func.func @transform_1(%arg0: i32) -> (i32, i32) {
    %c0_i32 = arith.constant 0 : i32
    %c0_i32_0 = arith.constant 0 : i32
    return %arg0, %c0_i32 : i32, i32
  }
  func.func @transform_2(%arg0: i32) -> (i32, i32) {
    %c0_i32 = arith.constant 0 : i32
    %c0_i32_0 = arith.constant 0 : i32
    return %arg0, %c0_i32 : i32, i32
  }
  func.func @transform_3(%arg0: i32) -> (i32, i32) {
    %c0_i32 = arith.constant 0 : i32
    %c0_i32_0 = arith.constant 0 : i32
    %c0_i32_1 = arith.constant 0 : i32
    return %c0_i32, %c0_i32_0 : i32, i32
  }
  func.func @transform_4(%arg0: i32) -> (i32, i32) {
    %c0_i32 = arith.constant 0 : i32
    %c0_i32_0 = arith.constant 0 : i32
    %c0_i32_1 = arith.constant 0 : i32
    return %c0_i32, %c0_i32_0 : i32, i32
  }
  func.func @transform_5(%arg0: i32) -> (i32, i32) {
    %c0_i32 = arith.constant 0 : i32
    %c0_i32_0 = arith.constant 0 : i32
    %c0_i32_1 = arith.constant 0 : i32
    return %c0_i32, %c0_i32_0 : i32, i32
  }
  func.func @transform_6(%arg0: i32) -> (i32, i32) {
    %c0_i32 = arith.constant 0 : i32
    %c0_i32_0 = arith.constant 0 : i32
    %c0_i32_1 = arith.constant 0 : i32
    return %c0_i32, %c0_i32_0 : i32, i32
  }
  func.func @transform_7(%arg0: i32) -> (i32, i32) {
    %c0_i32 = arith.constant 0 : i32
    %c0_i32_0 = arith.constant 0 : i32
    %c0_i32_1 = arith.constant 0 : i32
    return %c0_i32, %c0_i32_0 : i32, i32
  }
  func.func @transform_8(%arg0: i32) -> (i32, i32) {
    %c0_i32 = arith.constant 0 : i32
    %c0_i32_0 = arith.constant 0 : i32
    return %arg0, %c0_i32 : i32, i32
  }
}

</mosaic_0001>

<llo_original>
// kernel: tpu_custom_call.1
$region0: #{tpu_custom_call.1}
  #allocation0 [shape = 'u32[]', space=smem, size = 0x4, offset = 0x4, fixed_abs, tag = 'smem constant byte address 0x4 - core index']
  #allocation1 [shape = 'u32[72,128]{1,0:T(1,128)}', space=vmem, size = 0x9000, scoped, tag = 'internal scratch']
  %s0 = inlined_call_operand.hbm [shape: f32[16,32], index: 0, kind: input, shape index: {}]
  %s1 = inlined_call_operand.hbm [shape: f32[16,32], index: 1, kind: input, shape index: {}]
  %s2 = inlined_call_operand.hbm [shape: f32[16,32], index: 2, kind: input, shape index: {}]
  %s3 = inlined_call_operand.hbm [shape: bf16[32,32], index: 3, kind: input, shape index: {}]
  %s4 = inlined_call_operand.hbm [shape: bf16[32,32], index: 4, kind: input, shape index: {}]
  %s5 = inlined_call_operand.hbm [shape: bf16[32,32], index: 5, kind: input, shape index: {}]
  %s6 = inlined_call_operand.hbm [shape: bf16[32,32], index: 6, kind: input, shape index: {}]
  %s7 = inlined_call_operand.vmem [shape: f32[1,32], index: 7, kind: input, shape index: {}]
  %s8 = inlined_call_operand.hbm [shape: f32[16,32], index: 8, kind: output, shape index: {}]
  %s9 = sld [smem:[#allocation0]]
  $region70: #{tpu_custom_call.1} parent=0
    _
  %s11 = ssub.s32 1, %s9
  %s12 = scalar_select 0, %s11, %s9
  $region1: #{tpu_custom_call.1} parent=0
    #allocation2 [shape = 'u8[8192]{0}', space=vmem, size = 0x2000, scoped, tag = 'input window, operand 0, single buffered']
    #allocation3 [shape = 's32[1]{0}', space=sflag, size = 0x4, scoped, tag = 'scoped memory for tpu_custom_call.1']
    #allocation4 [shape = 's32[1]{0}', space=sflag, size = 0x4, scoped, tag = 'scoped memory for tpu_custom_call.1']
    #allocation5 [shape = 'u8[8192]{0}', space=vmem, size = 0x2000, scoped, tag = 'input window, operand 1, single buffered']
    #allocation6 [shape = 's32[1]{0}', space=sflag, size = 0x4, scoped, tag = 'scoped memory for tpu_custom_call.1']
    #allocation7 [shape = 'u8[8192]{0}', space=vmem, size = 0x2000, scoped, tag = 'input window, operand 2, single buffered']
    #allocation8 [shape = 'u8[8192]{0}', space=vmem, size = 0x2000, scoped, tag = 'input window, operand 3, single buffered']
    #allocation9 [shape = 's32[1]{0}', space=sflag, size = 0x4, scoped, tag = 'scoped memory for tpu_custom_call.1']
    #allocation10 [shape = 'u8[8192]{0}', space=vmem, size = 0x2000, scoped, tag = 'input window, operand 4, single buffered']
    #allocation11 [shape = 'u8[8192]{0}', space=vmem, size = 0x2000, scoped, tag = 'input window, operand 5, single buffered']
    #allocation12 [shape = 's32[1]{0}', space=sflag, size = 0x4, scoped, tag = 'scoped memory for tpu_custom_call.1']
    #allocation13 [shape = 'u8[8192]{0}', space=vmem, size = 0x2000, scoped, tag = 'input window, operand 6, single buffered']
    #allocation14 [shape = 'u8[8192]{0}', space=vmem, size = 0x2000, scoped, tag = 'output window, operand 0, single buffered']
    %13 = vsyncpa [#allocation3], 0
    %14 = vsyncpa [#allocation6], 0
    %15 = vsyncpa [#allocation9], 0
    %16 = vsyncpa [#allocation12], 0
    %17 = vsyncpa [#allocation4], 0
    // Predicated region
    $region2: #{tpu_custom_call.1} parent=1 // pred_check
      _
    $region3: #{tpu_custom_call.1} parent=1 // pred_check_branch
      %19 = sbr.rel (0) target = $region5
    $region4: #{tpu_custom_call.1} parent=1 // pred_region
      %21 = vsyncadd [#allocation3], 0
      %s22 = sshll.u32 %s0, 4
      %s23 = int_to_ptr.hbm [resolvable:$true] %s22
      %s24 = sshll.u32 [#allocation2], 4
      %s25 = int_to_ptr.vmem [resolvable:$true] %s24
      %30 = dma.hbm_to_vmem [thread:$0]  %s23, 256, %s25, [#allocation3], 128, 128, 8
    $region5: #{tpu_custom_call.1} parent=1 // pred_fallthru
      _
    // Predicated region
    $region6: #{tpu_custom_call.1} parent=1 // pred_check
      _
    $region7: #{tpu_custom_call.1} parent=1 // pred_check_branch
      %32 = sbr.rel (0) target = $region9
    $region8: #{tpu_custom_call.1} parent=1 // pred_region
      %34 = vsyncadd [#allocation6], 0
      %s35 = sshll.u32 %s1, 4
      %s36 = int_to_ptr.hbm [resolvable:$true] %s35
      %s37 = sshll.u32 [#allocation5], 4
      %s38 = int_to_ptr.vmem [resolvable:$true] %s37
      %43 = dma.hbm_to_vmem [thread:$0]  %s36, 256, %s38, [#allocation6], 128, 128, 8
    $region9: #{tpu_custom_call.1} parent=1 // pred_fallthru
      _
    // Predicated region
    $region10: #{tpu_custom_call.1} parent=1 // pred_check
      _
    $region11: #{tpu_custom_call.1} parent=1 // pred_check_branch
      %45 = sbr.rel (0) target = $region13
    $region12: #{tpu_custom_call.1} parent=1 // pred_region
      %47 = vsyncadd [#allocation6], 0
      %s48 = sshll.u32 %s2, 4
      %s49 = int_to_ptr.hbm [resolvable:$true] %s48
      %s50 = sshll.u32 [#allocation7], 4
      %s51 = int_to_ptr.vmem [resolvable:$true] %s50
      %56 = dma.hbm_to_vmem [thread:$0]  %s49, 256, %s51, [#allocation6], 128, 128, 8
    $region13: #{tpu_custom_call.1} parent=1 // pred_fallthru
      _
    // Predicated region
    $region14: #{tpu_custom_call.1} parent=1 // pred_check
      _
    $region15: #{tpu_custom_call.1} parent=1 // pred_check_branch
      %58 = sbr.rel (0) target = $region17
    $region16: #{tpu_custom_call.1} parent=1 // pred_region
      %60 = vsyncadd [#allocation9], 0
      %s61 = sshll.u32 %s3, 4
      %s62 = int_to_ptr.hbm [resolvable:$true] %s61
      %s63 = sshll.u32 [#allocation8], 4
      %s64 = int_to_ptr.vmem [resolvable:$true] %s63
      %69 = dma.hbm_to_vmem [thread:$0]  %s62, 256, %s64, [#allocation9], 64, 64, 4
    $region17: #{tpu_custom_call.1} parent=1 // pred_fallthru
      _
    // Predicated region
    $region18: #{tpu_custom_call.1} parent=1 // pred_check
      _
    $region19: #{tpu_custom_call.1} parent=1 // pred_check_branch
      %71 = sbr.rel (0) target = $region21
    $region20: #{tpu_custom_call.1} parent=1 // pred_region
      %73 = vsyncadd [#allocation9], 0
      %s74 = sshll.u32 %s4, 4
      %s75 = int_to_ptr.hbm [resolvable:$true] %s74
      %s76 = sshll.u32 [#allocation10], 4
      %s77 = int_to_ptr.vmem [resolvable:$true] %s76
      %82 = dma.hbm_to_vmem [thread:$0]  %s75, 256, %s77, [#allocation9], 64, 64, 4
    $region21: #{tpu_custom_call.1} parent=1 // pred_fallthru
      _
    // Predicated region
    $region22: #{tpu_custom_call.1} parent=1 // pred_check
      _
    $region23: #{tpu_custom_call.1} parent=1 // pred_check_branch
      %84 = sbr.rel (0) target = $region25
    $region24: #{tpu_custom_call.1} parent=1 // pred_region
      %86 = vsyncadd [#allocation12], 0
      %s87 = sshll.u32 %s5, 4
      %s88 = int_to_ptr.hbm [resolvable:$true] %s87
      %s89 = sshll.u32 [#allocation11], 4
      %s90 = int_to_ptr.vmem [resolvable:$true] %s89
      %95 = dma.hbm_to_vmem [thread:$0]  %s88, 256, %s90, [#allocation12], 64, 64, 4
    $region25: #{tpu_custom_call.1} parent=1 // pred_fallthru
      _
    // Predicated region
    $region26: #{tpu_custom_call.1} parent=1 // pred_check
      _
    $region27: #{tpu_custom_call.1} parent=1 // pred_check_branch
      %97 = sbr.rel (0) target = $region29
    $region28: #{tpu_custom_call.1} parent=1 // pred_region
      %99 = vsyncadd [#allocation12], 0
      %s100 = sshll.u32 %s6, 4
      %s101 = int_to_ptr.hbm [resolvable:$true] %s100
      %s102 = sshll.u32 [#allocation13], 4
      %s103 = int_to_ptr.vmem [resolvable:$true] %s102
      %108 = dma.hbm_to_vmem [thread:$0]  %s101, 256, %s103, [#allocation12], 64, 64, 4
    $region29: #{tpu_custom_call.1} parent=1 // pred_fallthru
      _
    // Predicated region
    $region30: #{tpu_custom_call.1} parent=1 // pred_check
      _
    $region31: #{tpu_custom_call.1} parent=1 // pred_check_branch
      %110 = sbr.rel (0) target = $region33
    $region32: #{tpu_custom_call.1} parent=1 // pred_region
      _
    $region33: #{tpu_custom_call.1} parent=1 // pred_fallthru
      _
    // Predicated region
    $region34: #{tpu_custom_call.1} parent=1 // pred_check
      _
    $region35: #{tpu_custom_call.1} parent=1 // pred_check_branch
      %112 = sbr.rel (0) target = $region37
    $region36: #{tpu_custom_call.1} parent=1 // pred_region
      %114 = dma.done [#allocation3], 256
    $region37: #{tpu_custom_call.1} parent=1 // pred_fallthru
      _
    // Predicated region
    $region38: #{tpu_custom_call.1} parent=1 // pred_check
      _
    $region39: #{tpu_custom_call.1} parent=1 // pred_check_branch
      %116 = sbr.rel (0) target = $region41
    $region40: #{tpu_custom_call.1} parent=1 // pred_region
      %118 = dma.done [#allocation6], 256
    $region41: #{tpu_custom_call.1} parent=1 // pred_fallthru
      _
    // Predicated region
    $region42: #{tpu_custom_call.1} parent=1 // pred_check
      _
    $region43: #{tpu_custom_call.1} parent=1 // pred_check_branch
      %120 = sbr.rel (0) target = $region45
    $region44: #{tpu_custom_call.1} parent=1 // pred_region
      %122 = dma.done [#allocation6], 256
    $region45: #{tpu_custom_call.1} parent=1 // pred_fallthru
      _
    // Predicated region
    $region46: #{tpu_custom_call.1} parent=1 // pred_check
      _
    $region47: #{tpu_custom_call.1} parent=1 // pred_check_branch
      %124 = sbr.rel (0) target = $region49
    $region48: #{tpu_custom_call.1} parent=1 // pred_region
      %126 = dma.done [#allocation9], 256
    $region49: #{tpu_custom_call.1} parent=1 // pred_fallthru
      _
    // Predicated region
    $region50: #{tpu_custom_call.1} parent=1 // pred_check
      _
    $region51: #{tpu_custom_call.1} parent=1 // pred_check_branch
      %128 = sbr.rel (0) target = $region53
    $region52: #{tpu_custom_call.1} parent=1 // pred_region
      %130 = dma.done [#allocation9], 256
    $region53: #{tpu_custom_call.1} parent=1 // pred_fallthru
      _
    // Predicated region
    $region54: #{tpu_custom_call.1} parent=1 // pred_check
      _
    $region55: #{tpu_custom_call.1} parent=1 // pred_check_branch
      %132 = sbr.rel (0) target = $region57
    $region56: #{tpu_custom_call.1} parent=1 // pred_region
      %134 = dma.done [#allocation12], 256
    $region57: #{tpu_custom_call.1} parent=1 // pred_fallthru
      _
    // Predicated region
    $region58: #{tpu_custom_call.1} parent=1 // pred_check
      _
    $region59: #{tpu_custom_call.1} parent=1 // pred_check_branch
      %136 = sbr.rel (0) target = $region61
    $region60: #{tpu_custom_call.1} parent=1 // pred_region
      %138 = dma.done [#allocation12], 256
    $region61: #{tpu_custom_call.1} parent=1 // pred_fallthru
      _
    %v140 = vld [vmem:[#allocation2] sm:$0xff]
    %v141 = vld [vmem:[#allocation2 + $0x8] sm:$0xff]
    %v142 = vpack.c.bf16 %v141, %v140
    %v143 = vld [vmem:[#allocation8] sm:$0xf]
    %v144 = vld [vmem:[#allocation8 + $0x4] sm:$0xf]
    %v145 = vld [vmem:[#allocation8 + $0x8] sm:$0xf]
    %v146 = vld [vmem:[#allocation8 + $0xc] sm:$0xf]
    %v151 = vunpack.c.l.b16 %v143
    %v152 = vunpack.c.l.b16 %v144
    %v153 = vunpack.c.l.b16 %v145
    %v154 = vunpack.c.l.b16 %v146
    %v155 = vpack.c.b16 %v152, %v151
    %v156 = vpack.c.b16 %v154, %v153
    %vm159 = vcmask 261120
    %v161 = vsel %vm159, %v142, 0
    %163 = vmatpush.bf16.msra.mxu0 0
    %164 = vmatpush.bf16.msra.mxu0 0
    %165 = vmatpush.bf16.msra.mxu0 0
    %166 = vmatpush.bf16.msra.mxu0 0
    %167 = vmatpush.bf16.msra.mxu0 0
    %168 = vmatpush.bf16.msra.mxu0 0
    %169 = vmatpush.bf16.msra.mxu0 %v156
    %170 = vmatpush.bf16.msra.mxu0 %v155
    %171 = vmatmul.bf16.gmra.mxu0 %v161
    %v172 = vpop.f32.mrf.mxu0
    %v173 = vadd.f32 0.0, %v172
    %v174 = vpop.f32.mrf.mxu0
    %v175 = vadd.f32 0.0, %v174
    %176 = vdwg.mxu0
    %v177 = vld [vmem:[#allocation5] sm:$0xff]
    %v178 = vld [vmem:[#allocation5 + $0x8] sm:$0xff]
    %v179 = vpack.c.bf16 %v178, %v177
    %v180 = vld [vmem:[#allocation10] sm:$0xf]
    %v181 = vld [vmem:[#allocation10 + $0x4] sm:$0xf]
    %v182 = vld [vmem:[#allocation10 + $0x8] sm:$0xf]
    %v183 = vld [vmem:[#allocation10 + $0xc] sm:$0xf]
    %v188 = vunpack.c.l.b16 %v180
    %v189 = vunpack.c.l.b16 %v181
    %v190 = vunpack.c.l.b16 %v182
    %v191 = vunpack.c.l.b16 %v183
    %v192 = vpack.c.b16 %v189, %v188
    %v193 = vpack.c.b16 %v191, %v190
    %v197 = vsel %vm159, %v179, 0
    %199 = vmatpush.bf16.msra.mxu0 0
    %200 = vmatpush.bf16.msra.mxu0 0
    %201 = vmatpush.bf16.msra.mxu0 0
    %202 = vmatpush.bf16.msra.mxu0 0
    %203 = vmatpush.bf16.msra.mxu0 0
    %204 = vmatpush.bf16.msra.mxu0 0
    %205 = vmatpush.bf16.msra.mxu0 %v193
    %206 = vmatpush.bf16.msra.mxu0 %v192
    %207 = vmatmul.bf16.gmra.mxu0 %v197
    %v208 = vpop.f32.mrf.mxu0
    %v209 = vadd.f32 0.0, %v208
    %v210 = vpop.f32.mrf.mxu0
    %v211 = vadd.f32 0.0, %v210
    %212 = vdwg.mxu0
    %v213 = vld [vmem:[#allocation7] sm:$0xff]
    %v214 = vld [vmem:[#allocation7 + $0x8] sm:$0xff]
    %v215 = vpack.c.bf16 %v214, %v213
    %v216 = vld [vmem:[#allocation11] sm:$0xf]
    %v217 = vld [vmem:[#allocation11 + $0x4] sm:$0xf]
    %v218 = vld [vmem:[#allocation11 + $0x8] sm:$0xf]
    %v219 = vld [vmem:[#allocation11 + $0xc] sm:$0xf]
    %v224 = vunpack.c.l.b16 %v216
    %v225 = vunpack.c.l.b16 %v217
    %v226 = vunpack.c.l.b16 %v218
    %v227 = vunpack.c.l.b16 %v219
    %v228 = vpack.c.b16 %v225, %v224
    %v229 = vpack.c.b16 %v227, %v226
    %v233 = vsel %vm159, %v215, 0
    %235 = vmatpush.bf16.msra.mxu0 0
    %236 = vmatpush.bf16.msra.mxu0 0
    %237 = vmatpush.bf16.msra.mxu0 0
    %238 = vmatpush.bf16.msra.mxu0 0
    %239 = vmatpush.bf16.msra.mxu0 0
    %240 = vmatpush.bf16.msra.mxu0 0
    %241 = vmatpush.bf16.msra.mxu0 %v229
    %242 = vmatpush.bf16.msra.mxu0 %v228
    %243 = vmatmul.bf16.gmra.mxu0 %v233
    %v244 = vpop.f32.mrf.mxu0
    %v245 = vadd.f32 0.0, %v244
    %v246 = vpop.f32.mrf.mxu0
    %v247 = vadd.f32 0.0, %v246
    %248 = vdwg.mxu0
    %v249 = vld [vmem:[#allocation13] sm:$0xf]
    %v250 = vld [vmem:[#allocation13 + $0x4] sm:$0xf]
    %v251 = vld [vmem:[#allocation13 + $0x8] sm:$0xf]
    %v252 = vld [vmem:[#allocation13 + $0xc] sm:$0xf]
    %v253 = vld [vmem:[%s7] sm:$0x1]
    %v255 = vperm.slane %v253, 0
    %v257 = vpack.c.bf16 %v173, %v173
    %v258 = vpack.c.bf16 %v209, %v209
    %v259 = vpack.c.bf16 %v245, %v245
    %vm260 = vcmask 64512
    %v262 = vsel %vm260, %v257, 0
    %v265 = vsel %vm260, %v258, 0
    %267 = vmatpush.bf16.xpose.msra.mxu0 0
    %268 = vmatpush.bf16.xpose.msra.mxu0 0
    %269 = vmatpush.bf16.xpose.msra.mxu0 0
    %270 = vmatpush.bf16.xpose.msra.mxu0 0
    %271 = vmatpush.bf16.xpose.msra.mxu0 0
    %272 = vmatpush.bf16.xpose.msra.mxu0 0
    %273 = vmatpush.bf16.xpose.msra.mxu0 0
    %274 = vmatpush.bf16.xpose.msra.mxu0 %v265
    %275 = vmatmul.bf16.gmra.mxu0 %v262
    %v276 = vpop.f32.mrf.mxu0
    %v277 = vadd.f32 0.0, %v276
    %v278 = vpop.f32.mrf.mxu0
    %279 = vdwg.mxu0
    %v280 = vsel %vm260, %v277, -inf
    %281 = vmax.xlane.f32.xlu0 %v280
    %v282 = vpop.xlane.xlu0 %281
    %v283 = vsub.f32 %v277, %v282
    %v284 = vmul.f32 %v283, 1.442695
    %v285 = vpow.pop %v284
    %v286 = vsel %vm260, %v285, 0.0
    %287 = vadd.xlane.f32.xlu0 %v286
    %v288 = vpop.xlane.xlu0 %287
    %v289 = vrcp.pop %v288
    %v290 = vmul.f32 %v285, %v289
    %v291 = vpack.c.bf16 %v290, %v290
    %v293 = vsel %vm260, %v291, 0
    %vm295 = vcmask 1043456
    %v297 = vsel %vm295, %v259, 0
    %299 = vmatpush.bf16.msra.mxu0 0
    %300 = vmatpush.bf16.msra.mxu0 0
    %301 = vmatpush.bf16.msra.mxu0 0
    %302 = vmatpush.bf16.msra.mxu0 0
    %303 = vmatpush.bf16.msra.mxu0 0
    %304 = vmatpush.bf16.msra.mxu0 0
    %305 = vmatpush.bf16.msra.mxu0 0
    %306 = vmatpush.bf16.msra.mxu0 %v297
    %307 = vmatmul.bf16.gmra.mxu0 %v293
    %v308 = vpop.f32.mrf.mxu0
    %v309 = vadd.f32 0.0, %v308
    %v310 = vpop.f32.mrf.mxu0
    %311 = vdwg.mxu0
    %v312 = vpack.c.bf16 %v309, %v309
    %v314 = vsel %vm260, %v312, 0
    %v317 = vsel %vm295, %v249, 0
    %319 = vmatpush.bf16.msra.mxu0 0
    %320 = vmatpush.bf16.msra.mxu0 0
    %321 = vmatpush.bf16.msra.mxu0 0
    %322 = vmatpush.bf16.msra.mxu0 0
    %323 = vmatpush.bf16.msra.mxu0 0
    %324 = vmatpush.bf16.msra.mxu0 0
    %325 = vmatpush.bf16.msra.mxu0 0
    %326 = vmatpush.bf16.msra.mxu0 %v317
    %327 = vmatmul.bf16.gmra.mxu0 %v314
    %v328 = vpop.f32.mrf.mxu0
    %v329 = vadd.f32 0.0, %v328
    %v330 = vpop.f32.mrf.mxu0
    %331 = vdwg.mxu0
    %v332 = vadd.f32 %v255, %v329
    %334 = vrot.lane.b32.xlu0 %v257, 120
    %v335 = vpop.permute.xlu0 %334
    %337 = vrot.lane.b32.xlu0 %v258, 120
    %v338 = vpop.permute.xlu0 %337
    %v340 = vsel %vm260, %v335, 0
    %v343 = vsel %vm260, %v338, 0
    %345 = vmatpush.bf16.xpose.msra.mxu0 0
    %346 = vmatpush.bf16.xpose.msra.mxu0 0
    %347 = vmatpush.bf16.xpose.msra.mxu0 0
    %348 = vmatpush.bf16.xpose.msra.mxu0 0
    %349 = vmatpush.bf16.xpose.msra.mxu0 0
    %350 = vmatpush.bf16.xpose.msra.mxu0 0
    %351 = vmatpush.bf16.xpose.msra.mxu0 0
    %352 = vmatpush.bf16.xpose.msra.mxu0 %v343
    %353 = vmatmul.bf16.gmra.mxu0 %v340
    %v354 = vpop.f32.mrf.mxu0
    %v355 = vadd.f32 0.0, %v354
    %v356 = vpop.f32.mrf.mxu0
    %357 = vdwg.mxu0
    %v358 = vsel %vm260, %v355, -inf
    %359 = vmax.xlane.f32.xlu0 %v358
    %v360 = vpop.xlane.xlu0 %359
    %v361 = vsub.f32 %v355, %v360
    %v362 = vmul.f32 %v361, 1.442695
    %v363 = vpow.pop %v362
    %v364 = vsel %vm260, %v363, 0.0
    %365 = vadd.xlane.f32.xlu0 %v364
    %v366 = vpop.xlane.xlu0 %365
    %v367 = vrcp.pop %v366
    %v368 = vmul.f32 %v363, %v367
    %v369 = vpack.c.bf16 %v368, %v368
    %371 = vrot.lane.b32.xlu0 %v259, 120
    %v372 = vpop.permute.xlu0 %371
    %v374 = vsel %vm260, %v369, 0
    %v377 = vsel %vm295, %v372, 0
    %379 = vmatpush.bf16.msra.mxu0 0
    %380 = vmatpush.bf16.msra.mxu0 0
    %381 = vmatpush.bf16.msra.mxu0 0
    %382 = vmatpush.bf16.msra.mxu0 0
    %383 = vmatpush.bf16.msra.mxu0 0
    %384 = vmatpush.bf16.msra.mxu0 0
    %385 = vmatpush.bf16.msra.mxu0 0
    %386 = vmatpush.bf16.msra.mxu0 %v377
    %387 = vmatmul.bf16.gmra.mxu0 %v374
    %v388 = vpop.f32.mrf.mxu0
    %v389 = vadd.f32 0.0, %v388
    %v390 = vpop.f32.mrf.mxu0
    %391 = vdwg.mxu0
    %v392 = vpack.c.bf16 %v389, %v389
    %v394 = vsel %vm260, %v392, 0
    %v397 = vsel %vm295, %v250, 0
    %399 = vmatpush.bf16.msra.mxu0 0
    %400 = vmatpush.bf16.msra.mxu0 0
    %401 = vmatpush.bf16.msra.mxu0 0
    %402 = vmatpush.bf16.msra.mxu0 0
    %403 = vmatpush.bf16.msra.mxu0 0
    %404 = vmatpush.bf16.msra.mxu0 0
    %405 = vmatpush.bf16.msra.mxu0 0
    %406 = vmatpush.bf16.msra.mxu0 %v397
    %407 = vmatmul.bf16.gmra.mxu0 %v394
    %v408 = vpop.f32.mrf.mxu0
    %v409 = vadd.f32 0.0, %v408
    %v410 = vpop.f32.mrf.mxu0
    %411 = vdwg.mxu0
    %v412 = vadd.f32 %v332, %v409
    %413 = vrot.lane.b32.xlu0 %v257, 112
    %v414 = vpop.permute.xlu0 %413
    %415 = vrot.lane.b32.xlu0 %v258, 112
    %v416 = vpop.permute.xlu0 %415
    %v418 = vsel %vm260, %v414, 0
    %v421 = vsel %vm260, %v416, 0
    %423 = vmatpush.bf16.xpose.msra.mxu0 0
    %424 = vmatpush.bf16.xpose.msra.mxu0 0
    %425 = vmatpush.bf16.xpose.msra.mxu0 0
    %426 = vmatpush.bf16.xpose.msra.mxu0 0
    %427 = vmatpush.bf16.xpose.msra.mxu0 0
    %428 = vmatpush.bf16.xpose.msra.mxu0 0
    %429 = vmatpush.bf16.xpose.msra.mxu0 0
    %430 = vmatpush.bf16.xpose.msra.mxu0 %v421
    %431 = vmatmul.bf16.gmra.mxu0 %v418
    %v432 = vpop.f32.mrf.mxu0
    %v433 = vadd.f32 0.0, %v432
    %v434 = vpop.f32.mrf.mxu0
    %435 = vdwg.mxu0
    %v436 = vsel %vm260, %v433, -inf
    %437 = vmax.xlane.f32.xlu0 %v436
    %v438 = vpop.xlane.xlu0 %437
    %v439 = vsub.f32 %v433, %v438
    %v440 = vmul.f32 %v439, 1.442695
    %v441 = vpow.pop %v440
    %v442 = vsel %vm260, %v441, 0.0
    %443 = vadd.xlane.f32.xlu0 %v442
    %v444 = vpop.xlane.xlu0 %443
    %v445 = vrcp.pop %v444
    %v446 = vmul.f32 %v441, %v445
    %v447 = vpack.c.bf16 %v446, %v446
    %448 = vrot.lane.b32.xlu0 %v259, 112
    %v449 = vpop.permute.xlu0 %448
    %v451 = vsel %vm260, %v447, 0
    %v454 = vsel %vm295, %v449, 0
    %456 = vmatpush.bf16.msra.mxu0 0
    %457 = vmatpush.bf16.msra.mxu0 0
    %458 = vmatpush.bf16.msra.mxu0 0
    %459 = vmatpush.bf16.msra.mxu0 0
    %460 = vmatpush.bf16.msra.mxu0 0
    %461 = vmatpush.bf16.msra.mxu0 0
    %462 = vmatpush.bf16.msra.mxu0 0
    %463 = vmatpush.bf16.msra.mxu0 %v454
    %464 = vmatmul.bf16.gmra.mxu0 %v451
    %v465 = vpop.f32.mrf.mxu0
    %v466 = vadd.f32 0.0, %v465
    %v467 = vpop.f32.mrf.mxu0
    %468 = vdwg.mxu0
    %v469 = vpack.c.bf16 %v466, %v466
    %v471 = vsel %vm260, %v469, 0
    %v474 = vsel %vm295, %v251, 0
    %476 = vmatpush.bf16.msra.mxu0 0
    %477 = vmatpush.bf16.msra.mxu0 0
    %478 = vmatpush.bf16.msra.mxu0 0
    %479 = vmatpush.bf16.msra.mxu0 0
    %480 = vmatpush.bf16.msra.mxu0 0
    %481 = vmatpush.bf16.msra.mxu0 0
    %482 = vmatpush.bf16.msra.mxu0 0
    %483 = vmatpush.bf16.msra.mxu0 %v474
    %484 = vmatmul.bf16.gmra.mxu0 %v471
    %v485 = vpop.f32.mrf.mxu0
    %v486 = vadd.f32 0.0, %v485
    %v487 = vpop.f32.mrf.mxu0
    %488 = vdwg.mxu0
    %v489 = vadd.f32 %v412, %v486
    %490 = vrot.lane.b32.xlu0 %v257, 104
    %v491 = vpop.permute.xlu0 %490
    %492 = vrot.lane.b32.xlu0 %v258, 104
    %v493 = vpop.permute.xlu0 %492
    %v495 = vsel %vm260, %v491, 0
    %v498 = vsel %vm260, %v493, 0
    %500 = vmatpush.bf16.xpose.msra.mxu0 0
    %501 = vmatpush.bf16.xpose.msra.mxu0 0
    %502 = vmatpush.bf16.xpose.msra.mxu0 0
    %503 = vmatpush.bf16.xpose.msra.mxu0 0
    %504 = vmatpush.bf16.xpose.msra.mxu0 0
    %505 = vmatpush.bf16.xpose.msra.mxu0 0
    %506 = vmatpush.bf16.xpose.msra.mxu0 0
    %507 = vmatpush.bf16.xpose.msra.mxu0 %v498
    %508 = vmatmul.bf16.gmra.mxu0 %v495
    %v509 = vpop.f32.mrf.mxu0
    %v510 = vadd.f32 0.0, %v509
    %v511 = vpop.f32.mrf.mxu0
    %512 = vdwg.mxu0
    %v513 = vsel %vm260, %v510, -inf
    %514 = vmax.xlane.f32.xlu0 %v513
    %v515 = vpop.xlane.xlu0 %514
    %v516 = vsub.f32 %v510, %v515
    %v517 = vmul.f32 %v516, 1.442695
    %v518 = vpow.pop %v517
    %v519 = vsel %vm260, %v518, 0.0
    %520 = vadd.xlane.f32.xlu0 %v519
    %v521 = vpop.xlane.xlu0 %520
    %v522 = vrcp.pop %v521
    %v523 = vmul.f32 %v518, %v522
    %v524 = vpack.c.bf16 %v523, %v523
    %525 = vrot.lane.b32.xlu0 %v259, 104
    %v526 = vpop.permute.xlu0 %525
    %v528 = vsel %vm260, %v524, 0
    %v531 = vsel %vm295, %v526, 0
    %533 = vmatpush.bf16.msra.mxu0 0
    %534 = vmatpush.bf16.msra.mxu0 0
    %535 = vmatpush.bf16.msra.mxu0 0
    %536 = vmatpush.bf16.msra.mxu0 0
    %537 = vmatpush.bf16.msra.mxu0 0
    %538 = vmatpush.bf16.msra.mxu0 0
    %539 = vmatpush.bf16.msra.mxu0 0
    %540 = vmatpush.bf16.msra.mxu0 %v531
    %541 = vmatmul.bf16.gmra.mxu0 %v528
    %v542 = vpop.f32.mrf.mxu0
    %v543 = vadd.f32 0.0, %v542
    %v544 = vpop.f32.mrf.mxu0
    %545 = vdwg.mxu0
    %v546 = vpack.c.bf16 %v543, %v543
    %v548 = vsel %vm260, %v546, 0
    %v551 = vsel %vm295, %v252, 0
    %553 = vmatpush.bf16.msra.mxu0 0
    %554 = vmatpush.bf16.msra.mxu0 0
    %555 = vmatpush.bf16.msra.mxu0 0
    %556 = vmatpush.bf16.msra.mxu0 0
    %557 = vmatpush.bf16.msra.mxu0 0
    %558 = vmatpush.bf16.msra.mxu0 0
    %559 = vmatpush.bf16.msra.mxu0 0
    %560 = vmatpush.bf16.msra.mxu0 %v551
    %561 = vmatmul.bf16.gmra.mxu0 %v548
    %v562 = vpop.f32.mrf.mxu0
    %v563 = vadd.f32 0.0, %v562
    %v564 = vpop.f32.mrf.mxu0
    %565 = vdwg.mxu0
    %v566 = vadd.f32 %v489, %v563
    %567 = vst.msk [vmem:[#allocation14] sm:$0xff] %vm159, %v566
    %v568 = vpack.c.bf16 %v175, %v175
    %v569 = vpack.c.bf16 %v211, %v211
    %v570 = vpack.c.bf16 %v247, %v247
    %v572 = vsel %vm260, %v568, 0
    %v575 = vsel %vm260, %v569, 0
    %577 = vmatpush.bf16.xpose.msra.mxu0 0
    %578 = vmatpush.bf16.xpose.msra.mxu0 0
    %579 = vmatpush.bf16.xpose.msra.mxu0 0
    %580 = vmatpush.bf16.xpose.msra.mxu0 0
    %581 = vmatpush.bf16.xpose.msra.mxu0 0
    %582 = vmatpush.bf16.xpose.msra.mxu0 0
    %583 = vmatpush.bf16.xpose.msra.mxu0 0
    %584 = vmatpush.bf16.xpose.msra.mxu0 %v575
    %585 = vmatmul.bf16.gmra.mxu0 %v572
    %v586 = vpop.f32.mrf.mxu0
    %v587 = vadd.f32 0.0, %v586
    %v588 = vpop.f32.mrf.mxu0
    %589 = vdwg.mxu0
    %v590 = vsel %vm260, %v587, -inf
    %591 = vmax.xlane.f32.xlu0 %v590
    %v592 = vpop.xlane.xlu0 %591
    %v593 = vsub.f32 %v587, %v592
    %v594 = vmul.f32 %v593, 1.442695
    %v595 = vpow.pop %v594
    %v596 = vsel %vm260, %v595, 0.0
    %597 = vadd.xlane.f32.xlu0 %v596
    %v598 = vpop.xlane.xlu0 %597
    %v599 = vrcp.pop %v598
    %v600 = vmul.f32 %v595, %v599
    %v601 = vpack.c.bf16 %v600, %v600
    %v603 = vsel %vm260, %v601, 0
    %v606 = vsel %vm295, %v570, 0
    %608 = vmatpush.bf16.msra.mxu0 0
    %609 = vmatpush.bf16.msra.mxu0 0
    %610 = vmatpush.bf16.msra.mxu0 0
    %611 = vmatpush.bf16.msra.mxu0 0
    %612 = vmatpush.bf16.msra.mxu0 0
    %613 = vmatpush.bf16.msra.mxu0 0
    %614 = vmatpush.bf16.msra.mxu0 0
    %615 = vmatpush.bf16.msra.mxu0 %v606
    %616 = vmatmul.bf16.gmra.mxu0 %v603
    %v617 = vpop.f32.mrf.mxu0
    %v618 = vadd.f32 0.0, %v617
    %v619 = vpop.f32.mrf.mxu0
    %620 = vdwg.mxu0
    %v621 = vpack.c.bf16 %v618, %v618
    %v623 = vsel %vm260, %v621, 0
    %625 = vmatpush.bf16.msra.mxu0 0
    %626 = vmatpush.bf16.msra.mxu0 0
    %627 = vmatpush.bf16.msra.mxu0 0
    %628 = vmatpush.bf16.msra.mxu0 0
    %629 = vmatpush.bf16.msra.mxu0 0
    %630 = vmatpush.bf16.msra.mxu0 0
    %631 = vmatpush.bf16.msra.mxu0 0
    %632 = vmatpush.bf16.msra.mxu0 %v317
    %633 = vmatmul.bf16.gmra.mxu0 %v623
    %v634 = vpop.f32.mrf.mxu0
    %v635 = vadd.f32 0.0, %v634
    %v636 = vpop.f32.mrf.mxu0
    %637 = vdwg.mxu0
    %v638 = vadd.f32 %v255, %v635
    %640 = vrot.lane.b32.xlu0 %v568, 120
    %v641 = vpop.permute.xlu0 %640
    %643 = vrot.lane.b32.xlu0 %v569, 120
    %v644 = vpop.permute.xlu0 %643
    %v646 = vsel %vm260, %v641, 0
    %v649 = vsel %vm260, %v644, 0
    %651 = vmatpush.bf16.xpose.msra.mxu0 0
    %652 = vmatpush.bf16.xpose.msra.mxu0 0
    %653 = vmatpush.bf16.xpose.msra.mxu0 0
    %654 = vmatpush.bf16.xpose.msra.mxu0 0
    %655 = vmatpush.bf16.xpose.msra.mxu0 0
    %656 = vmatpush.bf16.xpose.msra.mxu0 0
    %657 = vmatpush.bf16.xpose.msra.mxu0 0
    %658 = vmatpush.bf16.xpose.msra.mxu0 %v649
    %659 = vmatmul.bf16.gmra.mxu0 %v646
    %v660 = vpop.f32.mrf.mxu0
    %v661 = vadd.f32 0.0, %v660
    %v662 = vpop.f32.mrf.mxu0
    %663 = vdwg.mxu0
    %v664 = vsel %vm260, %v661, -inf
    %665 = vmax.xlane.f32.xlu0 %v664
    %v666 = vpop.xlane.xlu0 %665
    %v667 = vsub.f32 %v661, %v666
    %v668 = vmul.f32 %v667, 1.442695
    %v669 = vpow.pop %v668
    %v670 = vsel %vm260, %v669, 0.0
    %671 = vadd.xlane.f32.xlu0 %v670
    %v672 = vpop.xlane.xlu0 %671
    %v673 = vrcp.pop %v672
    %v674 = vmul.f32 %v669, %v673
    %v675 = vpack.c.bf16 %v674, %v674
    %677 = vrot.lane.b32.xlu0 %v570, 120
    %v678 = vpop.permute.xlu0 %677
    %v680 = vsel %vm260, %v675, 0
    %v683 = vsel %vm295, %v678, 0
    %685 = vmatpush.bf16.msra.mxu0 0
    %686 = vmatpush.bf16.msra.mxu0 0
    %687 = vmatpush.bf16.msra.mxu0 0
    %688 = vmatpush.bf16.msra.mxu0 0
    %689 = vmatpush.bf16.msra.mxu0 0
    %690 = vmatpush.bf16.msra.mxu0 0
    %691 = vmatpush.bf16.msra.mxu0 0
    %692 = vmatpush.bf16.msra.mxu0 %v683
    %693 = vmatmul.bf16.gmra.mxu0 %v680
    %v694 = vpop.f32.mrf.mxu0
    %v695 = vadd.f32 0.0, %v694
    %v696 = vpop.f32.mrf.mxu0
    %697 = vdwg.mxu0
    %v698 = vpack.c.bf16 %v695, %v695
    %v700 = vsel %vm260, %v698, 0
    %702 = vmatpush.bf16.msra.mxu0 0
    %703 = vmatpush.bf16.msra.mxu0 0
    %704 = vmatpush.bf16.msra.mxu0 0
    %705 = vmatpush.bf16.msra.mxu0 0
    %706 = vmatpush.bf16.msra.mxu0 0
    %707 = vmatpush.bf16.msra.mxu0 0
    %708 = vmatpush.bf16.msra.mxu0 0
    %709 = vmatpush.bf16.msra.mxu0 %v397
    %710 = vmatmul.bf16.gmra.mxu0 %v700
    %v711 = vpop.f32.mrf.mxu0
    %v712 = vadd.f32 0.0, %v711
    %v713 = vpop.f32.mrf.mxu0
    %714 = vdwg.mxu0
    %v715 = vadd.f32 %v638, %v712
    %716 = vrot.lane.b32.xlu0 %v568, 112
    %v717 = vpop.permute.xlu0 %716
    %718 = vrot.lane.b32.xlu0 %v569, 112
    %v719 = vpop.permute.xlu0 %718
    %v721 = vsel %vm260, %v717, 0
    %v724 = vsel %vm260, %v719, 0
    %726 = vmatpush.bf16.xpose.msra.mxu0 0
    %727 = vmatpush.bf16.xpose.msra.mxu0 0
    %728 = vmatpush.bf16.xpose.msra.mxu0 0
    %729 = vmatpush.bf16.xpose.msra.mxu0 0
    %730 = vmatpush.bf16.xpose.msra.mxu0 0
    %731 = vmatpush.bf16.xpose.msra.mxu0 0
    %732 = vmatpush.bf16.xpose.msra.mxu0 0
    %733 = vmatpush.bf16.xpose.msra.mxu0 %v724
    %734 = vmatmul.bf16.gmra.mxu0 %v721
    %v735 = vpop.f32.mrf.mxu0
    %v736 = vadd.f32 0.0, %v735
    %v737 = vpop.f32.mrf.mxu0
    %738 = vdwg.mxu0
    %v739 = vsel %vm260, %v736, -inf
    %740 = vmax.xlane.f32.xlu0 %v739
    %v741 = vpop.xlane.xlu0 %740
    %v742 = vsub.f32 %v736, %v741
    %v743 = vmul.f32 %v742, 1.442695
    %v744 = vpow.pop %v743
    %v745 = vsel %vm260, %v744, 0.0
    %746 = vadd.xlane.f32.xlu0 %v745
    %v747 = vpop.xlane.xlu0 %746
    %v748 = vrcp.pop %v747
    %v749 = vmul.f32 %v744, %v748
    %v750 = vpack.c.bf16 %v749, %v749
    %751 = vrot.lane.b32.xlu0 %v570, 112
    %v752 = vpop.permute.xlu0 %751
    %v754 = vsel %vm260, %v750, 0
    %v757 = vsel %vm295, %v752, 0
    %759 = vmatpush.bf16.msra.mxu0 0
    %760 = vmatpush.bf16.msra.mxu0 0
    %761 = vmatpush.bf16.msra.mxu0 0
    %762 = vmatpush.bf16.msra.mxu0 0
    %763 = vmatpush.bf16.msra.mxu0 0
    %764 = vmatpush.bf16.msra.mxu0 0
    %765 = vmatpush.bf16.msra.mxu0 0
    %766 = vmatpush.bf16.msra.mxu0 %v757
    %767 = vmatmul.bf16.gmra.mxu0 %v754
    %v768 = vpop.f32.mrf.mxu0
    %v769 = vadd.f32 0.0, %v768
    %v770 = vpop.f32.mrf.mxu0
    %771 = vdwg.mxu0
    %v772 = vpack.c.bf16 %v769, %v769
    %v774 = vsel %vm260, %v772, 0
    %776 = vmatpush.bf16.msra.mxu0 0
    %777 = vmatpush.bf16.msra.mxu0 0
    %778 = vmatpush.bf16.msra.mxu0 0
    %779 = vmatpush.bf16.msra.mxu0 0
    %780 = vmatpush.bf16.msra.mxu0 0
    %781 = vmatpush.bf16.msra.mxu0 0
    %782 = vmatpush.bf16.msra.mxu0 0
    %783 = vmatpush.bf16.msra.mxu0 %v474
    %784 = vmatmul.bf16.gmra.mxu0 %v774
    %v785 = vpop.f32.mrf.mxu0
    %v786 = vadd.f32 0.0, %v785
    %v787 = vpop.f32.mrf.mxu0
    %788 = vdwg.mxu0
    %v789 = vadd.f32 %v715, %v786
    %790 = vrot.lane.b32.xlu0 %v568, 104
    %v791 = vpop.permute.xlu0 %790
    %792 = vrot.lane.b32.xlu0 %v569, 104
    %v793 = vpop.permute.xlu0 %792
    %v795 = vsel %vm260, %v791, 0
    %v798 = vsel %vm260, %v793, 0
    %800 = vmatpush.bf16.xpose.msra.mxu0 0
    %801 = vmatpush.bf16.xpose.msra.mxu0 0
    %802 = vmatpush.bf16.xpose.msra.mxu0 0
    %803 = vmatpush.bf16.xpose.msra.mxu0 0
    %804 = vmatpush.bf16.xpose.msra.mxu0 0
    %805 = vmatpush.bf16.xpose.msra.mxu0 0
    %806 = vmatpush.bf16.xpose.msra.mxu0 0
    %807 = vmatpush.bf16.xpose.msra.mxu0 %v798
    %808 = vmatmul.bf16.gmra.mxu0 %v795
    %v809 = vpop.f32.mrf.mxu0
    %v810 = vadd.f32 0.0, %v809
    %v811 = vpop.f32.mrf.mxu0
    %812 = vdwg.mxu0
    %v813 = vsel %vm260, %v810, -inf
    %814 = vmax.xlane.f32.xlu0 %v813
    %v815 = vpop.xlane.xlu0 %814
    %v816 = vsub.f32 %v810, %v815
    %v817 = vmul.f32 %v816, 1.442695
    %v818 = vpow.pop %v817
    %v819 = vsel %vm260, %v818, 0.0
    %820 = vadd.xlane.f32.xlu0 %v819
    %v821 = vpop.xlane.xlu0 %820
    %v822 = vrcp.pop %v821
    %v823 = vmul.f32 %v818, %v822
    %v824 = vpack.c.bf16 %v823, %v823
    %825 = vrot.lane.b32.xlu0 %v570, 104
    %v826 = vpop.permute.xlu0 %825
    %v828 = vsel %vm260, %v824, 0
    %v831 = vsel %vm295, %v826, 0
    %833 = vmatpush.bf16.msra.mxu0 0
    %834 = vmatpush.bf16.msra.mxu0 0
    %835 = vmatpush.bf16.msra.mxu0 0
    %836 = vmatpush.bf16.msra.mxu0 0
    %837 = vmatpush.bf16.msra.mxu0 0
    %838 = vmatpush.bf16.msra.mxu0 0
    %839 = vmatpush.bf16.msra.mxu0 0
    %840 = vmatpush.bf16.msra.mxu0 %v831
    %841 = vmatmul.bf16.gmra.mxu0 %v828
    %v842 = vpop.f32.mrf.mxu0
    %v843 = vadd.f32 0.0, %v842
    %v844 = vpop.f32.mrf.mxu0
    %845 = vdwg.mxu0
    %v846 = vpack.c.bf16 %v843, %v843
    %v848 = vsel %vm260, %v846, 0
    %850 = vmatpush.bf16.msra.mxu0 0
    %851 = vmatpush.bf16.msra.mxu0 0
    %852 = vmatpush.bf16.msra.mxu0 0
    %853 = vmatpush.bf16.msra.mxu0 0
    %854 = vmatpush.bf16.msra.mxu0 0
    %855 = vmatpush.bf16.msra.mxu0 0
    %856 = vmatpush.bf16.msra.mxu0 0
    %857 = vmatpush.bf16.msra.mxu0 %v551
    %858 = vmatmul.bf16.gmra.mxu0 %v848
    %v859 = vpop.f32.mrf.mxu0
    %v860 = vadd.f32 0.0, %v859
    %v861 = vpop.f32.mrf.mxu0
    %862 = vdwg.mxu0
    %v863 = vadd.f32 %v789, %v860
    %864 = vst.msk [vmem:[#allocation14 + $0x8] sm:$0xff] %vm159, %v863
    // Predicated region
    $region62: #{tpu_custom_call.1} parent=1 // pred_check
      _
    $region63: #{tpu_custom_call.1} parent=1 // pred_check_branch
      %866 = sbr.rel (0) target = $region65
    $region64: #{tpu_custom_call.1} parent=1 // pred_region
      %868 = vsyncadd [#allocation4], 0
      %s869 = sshll.u32 [#allocation14], 4
      %s870 = int_to_ptr.vmem [resolvable:$true] %s869
      %s871 = sshll.u32 %s8, 4
      %s872 = int_to_ptr.hbm [resolvable:$true] %s871
      %877 = dma.vmem_to_hbm [thread:$0]  %s870, 256, %s872, [#allocation4], 128, 128, 8
    $region65: #{tpu_custom_call.1} parent=1 // pred_fallthru
      _
    // Predicated region
    $region66: #{tpu_custom_call.1} parent=1 // pred_check
      _
    $region67: #{tpu_custom_call.1} parent=1 // pred_check_branch
      %879 = sbr.rel (0) target = $region69
    $region68: #{tpu_custom_call.1} parent=1 // pred_region
      %881 = dma.done [#allocation4], 256
    $region69: #{tpu_custom_call.1} parent=1 // pred_fallthru
      _
    %882 = vsyncpa [#allocation3], 1
    %883 = vsyncpa [#allocation6], 1
    %884 = vsyncpa [#allocation9], 1
    %885 = vsyncpa [#allocation12], 1
    %886 = vsyncpa [#allocation4], 1

</llo_original>
